<compile_context>
chip_gen: v7x
topology: tpu7x:2x2x1
jax: 0.10.0
libtpu: 0.0.40
codegen_flags: <defaults>
</compile_context>

<pallas_src>
import jax
import jax.numpy as jnp
from jax.experimental import pallas as pl
from jax.experimental.pallas import tpu as pltpu


def _round_up(x: int, m: int) -> int:
    return ((x + m - 1) // m) * m


def _choose_tile_m(M: int, E: int, itemsize: int) -> int:
    """Largest row-tile whose double-buffered [tm, E] input stays under ~24 MiB."""
    budget = 24 * 1024 * 1024
    tm = budget // (2 * max(1, E * itemsize))
    tm = min(tm, 2048, _round_up(M, 8))
    if tm >= 128:
        tm = (tm // 128) * 128          # lane-multiple rows -> clean tiling
    else:
        tm = max(8, (tm // 8) * 8)      # at least sublane-aligned
    return tm


def reward_head_kernel(h_ref, w_ref, o_ref):
    """One grid step: rewards[tile] = h_tile @ w_col  (MXU matvec, f32 acc)."""
    o_ref[...] = jnp.dot(
        h_ref[...], w_ref[...], preferred_element_type=jnp.float32
    ).astype(o_ref.dtype)


def reward_head_pallas(h, w_reward, *, tile_m=None):
    """h: [B, S, E], w_reward: [1, E] (nn.Linear weight layout) -> rewards [B, S] f32."""
    B, S, E = h.shape
    M = B * S
    h2 = h.reshape(M, E)
    # [E, 1] column so the in-kernel contraction is the canonical MXU form.
    w_col = jnp.asarray(w_reward).reshape(E, 1).astype(h2.dtype)

    itemsize = jnp.dtype(h2.dtype).itemsize
    tm = tile_m if tile_m is not None else _choose_tile_m(M, E, itemsize)
    m_pad = pl.cdiv(M, tm) * tm
    if m_pad != M:
        h2 = jnp.pad(h2, ((0, m_pad - M), (0, 0)))  # zero rows -> zero rewards, sliced off

    out = pl.pallas_call(
        reward_head_kernel,
        out_shape=jax.ShapeDtypeStruct((m_pad, 1), jnp.float32),
        grid=(m_pad // tm,),
        in_specs=[
            pl.BlockSpec((tm, E), lambda i: (i, 0)),   # pipelined h row-tiles
            pl.BlockSpec((E, 1), lambda i: (0, 0)),    # weight: loaded once, VMEM-resident
        ],
        out_specs=pl.BlockSpec((tm, 1), lambda i: (i, 0)),
        compiler_params=pltpu.CompilerParams(
            dimension_semantics=("parallel",),
            vmem_limit_bytes=64 * 1024 * 1024,
        ),
    )(h2, w_col)
    return out[:M, 0].reshape(B, S)


@jax.jit
def reward_model_forward(inputs, wte, w_reward):
    """Full RewardModel.forward: token ids -> rewards [B, S]."""
    # TODO(synk): stand-in for the MCPT transformer's hidden-state production.
    h = wte[inputs]                      # [B, S, E]
    return reward_head_pallas(h, w_reward)


if __name__ == "__main__":
    key = jax.random.PRNGKey(0)
    k_ids, k_wte, k_head = jax.random.split(key, 3)

    # Small, module-consistent shapes.
    batch, seq, n_embd, vocab = 2, 8, 32, 64

    # Token ids (the `inputs` argument of RewardModel.forward).
    inputs = jax.random.randint(k_ids, (batch, seq), 0, vocab, dtype=jnp.int32)

    # Deterministic parameters.
    wte = jax.random.normal(k_wte, (vocab, n_embd), dtype=jnp.float32) * 0.02
    # nn.Linear(n_embd, 1, bias=False).weight has shape (1, n_embd).
    w_reward = jax.random.normal(k_head, (1, n_embd), dtype=jnp.float32) * 0.02

    rewards = reward_model_forward(inputs, wte, w_reward)
    rewards = jax.block_until_ready(rewards)

    # Reference check in plain JAX: (h @ W.T).squeeze(-1).
    h_ref = wte[inputs]
    rewards_ref = jnp.matmul(h_ref, w_reward.T).squeeze(-1)
    assert rewards.shape == (batch, seq)
    max_err = float(jnp.max(jnp.abs(rewards - rewards_ref)))
    assert jnp.allclose(rewards, rewards_ref, atol=1e-4, rtol=1e-4), max_err

    print("KERNEL_OK")
</pallas_src>

<mosaic_0001>
module attributes {stable_mosaic.version = 11 : i64} {
  func.func @reward_head_kernel(%arg0: i32, %arg1: memref<16x32xf32, #tpu.memory_space<vmem>>, %arg2: memref<32x1xf32, #tpu.memory_space<vmem>>, %arg3: memref<16x1xf32, #tpu.memory_space<vmem>>) attributes {dimension_semantics = [#tpu.dimension_semantics<parallel>], iteration_bounds = array<i64: 1>, scalar_prefetch = 0 : i64, scratch_operands = 0 : i64, tpu.core_type = #tpu.core_type<tc>, window_params = [{transform_indices = @transform_0, window_bounds = array<i64: 16, 32>}, {pipeline_mode = #tpu.pipeline_mode<synchronous>, transform_indices = @transform_1, window_bounds = array<i64: 32, 1>}, {transform_indices = @transform_2, window_bounds = array<i64: 16, 1>}]} {
    %c0 = arith.constant 0 : index
    %c0_0 = arith.constant 0 : index
    %0 = vector.load %arg1[%c0, %c0_0] : memref<16x32xf32, #tpu.memory_space<vmem>>, vector<16x32xf32>
    %c0_1 = arith.constant 0 : index
    %c0_2 = arith.constant 0 : index
    %1 = vector.load %arg2[%c0_1, %c0_2] : memref<32x1xf32, #tpu.memory_space<vmem>>, vector<32x1xf32>
    %cst = arith.constant dense<0.000000e+00> : vector<16x1xf32>
    %2 = tpu.matmul %0, %1, %cst {dimension_numbers = #tpu.dot_dimension_numbers<[1], [0], [0], [1], [0, 0, 1, 1], [], []>} : vector<16x32xf32>, vector<32x1xf32>, vector<16x1xf32> -> vector<16x1xf32>
    %c0_3 = arith.constant 0 : index
    %c0_4 = arith.constant 0 : index
    %3 = vector.load %arg3[%c0_3, %c0_4] : memref<16x1xf32, #tpu.memory_space<vmem>>, vector<16x1xf32>
    tpu.vector_store %arg3[%c0_3, %c0_4], %2 {strides = array<i32>} : memref<16x1xf32, #tpu.memory_space<vmem>>, vector<16x1xf32>,
    return
  }
  func.func @transform_0(%arg0: i32) -> (i32, i32) {
    %c0_i32 = arith.constant 0 : i32
    %c0_i32_0 = arith.constant 0 : i32
    return %arg0, %c0_i32 : i32, i32
  }
  func.func @transform_1(%arg0: i32) -> (i32, i32) {
    %c0_i32 = arith.constant 0 : i32
    %c0_i32_0 = arith.constant 0 : i32
    %c0_i32_1 = arith.constant 0 : i32
    return %c0_i32, %c0_i32_0 : i32, i32
  }
  func.func @transform_2(%arg0: i32) -> (i32, i32) {
    %c0_i32 = arith.constant 0 : i32
    %c0_i32_0 = arith.constant 0 : i32
    return %arg0, %c0_i32 : i32, i32
  }
}

</mosaic_0001>

<llo_original>
// kernel: squeeze.1
$region0: #{squeeze.1}
  %s0 = inlined_call_operand.vmem [shape: f32[16], index: 0, kind: input, shape index: {}]
  %s1 = inlined_call_operand.hbm [shape: f32[2,8], index: 1, kind: output, shape index: {}]
  $region1: #{squeeze.1} parent=0
    #allocation0 [shape = 'u8[1024]{0}', space=vmem, size = 0x400, scoped, tag = 'operand span for operand 1']
    #allocation1 [shape = 's32[1]{0}', space=sflag, size = 0x4, scoped, tag = 'scoped memory for squeeze.1']
    #allocation2 [shape = 'u8[4096]{0}', space=vmem, size = 0x1000, scoped, tag = 'scoped mem for output reshape']
    #allocation3 [shape = 'u8[4096]{0}', space=vmem, size = 0x1000, scoped, tag = 'scoped mem for input reshape']
    %2 = vsyncpa [#allocation1], 0
    %s4 = sshllo.u32 0, 1
    %v5 = vld [vmem:[%s0] sm:%s4]
    %6 = vst [vmem:[#allocation3] sm:%s4] %v5
    %v7 = vld [vmem:[#allocation3] sm:$0x1]
    %vm8 = vcmask 64512
    %9 = vst.msk [vmem:[#allocation2] sm:$0x1] %vm8, %v7
    %v10 = vld [vmem:[#allocation3] sm:$0x1]
    %11 = vrot.lane.b32.xlu0 %v10, 120
    %v12 = vpop.permute.xlu0 %11
    %vm13 = vcmask 64512
    %s14 = scalar_lea.vmem [#allocation2], 1
    %15 = vst.msk [vmem:[%s14] sm:$0x1] %vm13, %v12
    %s17 = sshllo.u32 0, 2
    %v19 = vld [vmem:[#allocation2] sm:%s17]
    %s20 = sshllo.u32 0, 2
    %21 = vst [vmem:[#allocation0] sm:%s20] %v19
    %s23 = ssub.s32 32, 32
    %24 = vsyncadd [#allocation1], %s23
    %s26 = sshll.u32 [#allocation0], 4
    %s27 = int_to_ptr.vmem [resolvable:$true] %s26
    %29 = dma.vmem_to_hbm [thread:$0]  %s27, 32, %s1, [#allocation1]
    %30 = dma.done [#allocation1], 32
    %31 = vsyncpa [#allocation1], 1

// kernel: reward_model_forward.1
$region0: #{reward_model_forward.1}
  #allocation0 [shape = 'u32[]', space=smem, size = 0x4, offset = 0x4, fixed_abs, tag = 'smem constant byte address 0x4 - core index']
  #allocation1 [shape = 'u32[144,128]{1,0:T(1,128)}', space=vmem, size = 0x12000, scoped, tag = 'internal scratch']
  %s0 = inlined_call_operand.hbm [shape: f32[16,32], index: 0, kind: input, shape index: {}]
  %s1 = inlined_call_operand.hbm [shape: f32[32,1], index: 1, kind: input, shape index: {}]
  %s2 = inlined_call_operand.hbm [shape: f32[16,1], index: 2, kind: output, shape index: {}]
  %s3 = sld [smem:[#allocation0]]
  $region26: #{reward_model_forward.1} parent=0
    _
  %s5 = ssub.s32 1, %s3
  %s6 = scalar_select 0, %s5, %s3
  $region1: #{reward_model_forward.1} parent=0
    #allocation2 [shape = 'u8[8192]{0}', space=vmem, size = 0x2000, scoped, tag = 'input window, operand 0, single buffered']
    #allocation3 [shape = 's32[1]{0}', space=sflag, size = 0x4, scoped, tag = 'scoped memory for reward_model_forward.1']
    #allocation4 [shape = 's32[1]{0}', space=sflag, size = 0x4, scoped, tag = 'scoped memory for reward_model_forward.1']
    #allocation5 [shape = 'u8[16384]{0}', space=vmem, size = 0x4000, scoped, tag = 'input window, operand 1, single buffered']
    #allocation6 [shape = 's32[1]{0}', space=sflag, size = 0x4, scoped, tag = 'scoped memory for reward_model_forward.1']
    #allocation7 [shape = 'u8[8192]{0}', space=vmem, size = 0x2000, scoped, tag = 'output window, operand 0, single buffered']
    %7 = vsyncpa [#allocation3], 0
    %8 = vsyncpa [#allocation6], 0
    %9 = vsyncpa [#allocation4], 0
    // Predicated region
    $region2: #{reward_model_forward.1} parent=1 // pred_check
      _
    $region3: #{reward_model_forward.1} parent=1 // pred_check_branch
      %11 = sbr.rel (0) target = $region5
    $region4: #{reward_model_forward.1} parent=1 // pred_region
      %s13 = ssub.s32 256, 256
      %14 = vsyncadd [#allocation3], %s13
      %s15 = sshll.u32 [#allocation2], 4
      %s16 = int_to_ptr.vmem [resolvable:$true] %s15
      %21 = dma.hbm_to_vmem [thread:$0]  %s0, 256, %s16, [#allocation3], 128, 128, 8
    $region5: #{reward_model_forward.1} parent=1 // pred_fallthru
      _
    // Predicated region
    $region6: #{reward_model_forward.1} parent=1 // pred_check
      _
    $region7: #{reward_model_forward.1} parent=1 // pred_check_branch
      %23 = sbr.rel (0) target = $region9
    $region8: #{reward_model_forward.1} parent=1 // pred_region
      %s25 = ssub.s32 512, 512
      %26 = vsyncadd [#allocation6], %s25
      %s27 = sshll.u32 [#allocation5], 4
      %s28 = int_to_ptr.vmem [resolvable:$true] %s27
      %33 = dma.hbm_to_vmem [thread:$0]  %s1, 512, %s28, [#allocation6], 128, 128, 8
    $region9: #{reward_model_forward.1} parent=1 // pred_fallthru
      _
    // Predicated region
    $region10: #{reward_model_forward.1} parent=1 // pred_check
      _
    $region11: #{reward_model_forward.1} parent=1 // pred_check_branch
      %35 = sbr.rel (0) target = $region13
    $region12: #{reward_model_forward.1} parent=1 // pred_region
      %36 = dma.done [#allocation3], 256
    $region13: #{reward_model_forward.1} parent=1 // pred_fallthru
      _
    // Predicated region
    $region14: #{reward_model_forward.1} parent=1 // pred_check
      _
    $region15: #{reward_model_forward.1} parent=1 // pred_check_branch
      %38 = sbr.rel (0) target = $region17
    $region16: #{reward_model_forward.1} parent=1 // pred_region
      %39 = dma.done [#allocation6], 512
    $region17: #{reward_model_forward.1} parent=1 // pred_fallthru
      _
    %v40 = vld [vmem:[#allocation2] sm:$0xff]
    %v41 = vld [vmem:[#allocation2 + $0x8] sm:$0xff]
    %v42 = vld [vmem:[#allocation5] sm:$0xff]
    %v43 = vld [vmem:[#allocation5 + $0x8] sm:$0xff]
    %v44 = vld [vmem:[#allocation5 + $0x10] sm:$0xff]
    %v45 = vld [vmem:[#allocation5 + $0x18] sm:$0xff]
    %vm46 = vcmask 261120
    %v48 = vsel %vm46, %v40, 0
    %v51 = vsel %vm46, %v41, 0
    %53 = vmatprep.subr.mxu0 0.0
    %54 = vmatpush1.msra.mxu0 %v42
    %55 = vmatprep.subr.mxu0 0.0
    %56 = vmatpush1.msra.mxu0 %v43
    %57 = vmatprep.subr.mxu0 0.0
    %58 = vmatpush1.msra.mxu0 %v44
    %59 = vmatprep.subr.mxu0 0.0
    %60 = vmatpush1.msra.mxu0 %v45
    %61 = vmatprep.subr.mxu0 0.0
    %62 = vmatpush1.msra.mxu0 0.0
    %63 = vmatprep.subr.mxu0 0.0
    %64 = vmatpush1.msra.mxu0 0.0
    %65 = vmatprep.subr.mxu0 0.0
    %66 = vmatpush1.msra.mxu0 0.0
    %67 = vmatprep.subr.mxu0 0.0
    %68 = vmatpush1.msra.mxu0 0.0
    %69 = vmatprep.subr.mxu0 0.0
    %70 = vmatpush1.msra.mxu0 0.0
    %71 = vmatprep.subr.mxu0 0.0
    %72 = vmatpush1.msra.mxu0 0.0
    %73 = vmatprep.subr.mxu0 0.0
    %74 = vmatpush1.msra.mxu0 0.0
    %75 = vmatprep.subr.mxu0 0.0
    %76 = vmatpush1.msra.mxu0 0.0
    %77 = vmatprep.subr.mxu0 0.0
    %78 = vmatpush1.msra.mxu0 0.0
    %79 = vmatprep.subr.mxu0 0.0
    %80 = vmatpush1.msra.mxu0 0.0
    %81 = vmatprep.subr.mxu0 0.0
    %82 = vmatpush1.msra.mxu0 0.0
    %83 = vmatprep.subr.mxu0 0.0
    %84 = vmatpush1.msra.mxu0 0.0
    %85 = vmatprep.subr.mxu0 0.0
    %86 = vmatpush1.msra.mxu0 0.0
    %87 = vmatprep.subr.mxu0 0.0
    %88 = vmatpush1.msra.mxu0 0.0
    %89 = vmatprep.subr.mxu0 0.0
    %90 = vmatpush1.msra.mxu0 0.0
    %91 = vmatprep.subr.mxu0 0.0
    %92 = vmatpush1.msra.mxu0 0.0
    %93 = vmatprep.subr.mxu0 0.0
    %94 = vmatpush1.msra.mxu0 0.0
    %95 = vmatprep.subr.mxu0 0.0
    %96 = vmatpush1.msra.mxu0 0.0
    %97 = vmatprep.subr.mxu0 0.0
    %98 = vmatpush1.msra.mxu0 0.0
    %99 = vmatprep.subr.mxu0 0.0
    %100 = vmatpush1.msra.mxu0 0.0
    %101 = vmatprep.subr.mxu0 0.0
    %102 = vmatpush1.msra.mxu0 0.0
    %103 = vmatprep.subr.mxu0 0.0
    %104 = vmatpush1.msra.mxu0 0.0
    %105 = vmatprep.subr.mxu0 0.0
    %106 = vmatpush1.msra.mxu0 0.0
    %107 = vmatprep.subr.mxu0 0.0
    %108 = vmatpush1.msra.mxu0 0.0
    %109 = vmatprep.subr.mxu0 0.0
    %110 = vmatpush1.msra.mxu0 0.0
    %111 = vmatprep.subr.mxu0 0.0
    %112 = vmatpush1.msra.mxu0 0.0
    %113 = vmatprep.subr.mxu0 0.0
    %114 = vmatpush1.msra.mxu0 0.0
    %115 = vmatprep.subr.mxu0 0.0
    %116 = vmatpush1.msra.mxu0 0.0
    %117 = vmatprep.mubr.f32.mxu0 0.0
    %118 = vmatmul.mubr.f32.gmra.mrb[0].mxu0 %v48
    %v119 = vpop.f32.mrb[0].mxu0
    %v120 = vadd.f32 0.0, %v119
    %v121 = vpop.f32.mrb[0].mxu0
    %122 = vmatprep.mubr.f32.mxu0 0.0
    %123 = vmatmul.mubr.f32.gmra.mrb[0].mxu0 %v51
    %v124 = vpop.f32.mrb[0].mxu0
    %v125 = vadd.f32 0.0, %v124
    %v126 = vpop.f32.mrb[0].mxu0
    %127 = vdwg.mxu0
    %vm128 = vcmask 7168
    %129 = vst.msk [vmem:[#allocation7] sm:$0xff] %vm128, %v120
    %130 = vst.msk [vmem:[#allocation7 + $0x8] sm:$0xff] %vm128, %v125
    // Predicated region
    $region18: #{reward_model_forward.1} parent=1 // pred_check
      _
    $region19: #{reward_model_forward.1} parent=1 // pred_check_branch
      %132 = sbr.rel (0) target = $region21
    $region20: #{reward_model_forward.1} parent=1 // pred_region
      %s134 = ssub.s32 256, 256
      %135 = vsyncadd [#allocation4], %s134
      %s136 = sshll.u32 [#allocation7], 4
      %s137 = int_to_ptr.vmem [resolvable:$true] %s136
      %142 = dma.vmem_to_hbm [thread:$0]  %s137, 256, %s2, [#allocation4], 128, 128, 8
    $region21: #{reward_model_forward.1} parent=1 // pred_fallthru
      _
    // Predicated region
    $region22: #{reward_model_forward.1} parent=1 // pred_check
      _
    $region23: #{reward_model_forward.1} parent=1 // pred_check_branch
      %144 = sbr.rel (0) target = $region25
    $region24: #{reward_model_forward.1} parent=1 // pred_region
      %145 = dma.done [#allocation4], 256
    $region25: #{reward_model_forward.1} parent=1 // pred_fallthru
      _
    %146 = vsyncpa [#allocation3], 1
    %147 = vsyncpa [#allocation6], 1
    %148 = vsyncpa [#allocation4], 1

</llo_original>
